<compile_context>
chip_gen: v5e
topology: v5e:2x2
jax: 0.10.0
libtpu: 0.0.40
codegen_flags: <defaults>
</compile_context>

<pallas_src>
import math
import functools

import jax
import jax.numpy as jnp
from jax.experimental import pallas as pl
from jax.experimental.pallas import tpu as pltpu


def _categorical_kernel(state_ref, wphi_ref, bphi_ref, wp_ref, bp_ref, s_ref, q_ref):
    # ---- feature network: ReLU(state @ Wphi + bphi) ----
    feats = jnp.dot(state_ref[...], wphi_ref[...],
                    preferred_element_type=jnp.float32)
    feats = jnp.maximum(feats + bphi_ref[...], 0.0)                  # (Bt, F) f32

    # ---- all heads in one matmul: (Bt, F) @ (F, K_PAD) ----
    # Pad logit lanes carry a -1e9 bias so their exp underflows to 0.
    logits = jnp.dot(feats.astype(wp_ref.dtype), wp_ref[...],
                     preferred_element_type=jnp.float32) + bp_ref[...]

    # ---- vectorized per-head softmax + expectation ----
    # Global per-row max is an exact shift for every head's softmax.
    m = jnp.max(logits, axis=-1, keepdims=True)
    e = jnp.exp(logits - m)                                          # (Bt, K_PAD)

    # One MXU matmul against [indicator | a_values-weighted indicator]:
    # lanes [0, OUT_PAD)        -> per-head softmax denominator
    # lanes [OUT_PAD, 2*OUT_PAD) -> per-head expectation numerator
    r = jnp.dot(e.astype(s_ref.dtype), s_ref[...],
                preferred_element_type=jnp.float32)                  # (Bt, 2*OUT_PAD)
    out_pad = s_ref.shape[1] // 2
    denom = jnp.maximum(r[:, :out_pad], 1e-30)   # guard exp-underflow / padded lanes
    numer = r[:, out_pad:]

    inv = pl.reciprocal(denom, approx=True)                          # EUP vrcp
    inv = inv * (2.0 - denom * inv)                                  # one Newton step
    q = numer * inv                                                  # (Bt, OUT_PAD)

    # Store only the real heads: (Bt, n_output) masked store, no padded writeback.
    q_ref[...] = q[:, :q_ref.shape[1]]


def prepare_params(w_phi, b_phi, w_p, b_p, a_values, n_output, n_atoms,
                   *, compute_dtype=jnp.float32):
    """One-time parameter preprocessing (hoisted out of the per-call path).

    compute_dtype=jnp.bfloat16 enables the MXU-native deployment path (~1e-3
    accuracy); keep float32 for the 1e-5 reference check.
    """
    n_features = w_phi.shape[1]
    k = n_output * n_atoms
    k_pad = pl.cdiv(k, 128) * 128                  # lane-dense fused-head width
    out_pad = pl.cdiv(n_output, 128) * 128         # 128-aligned matmul halves

    # (n_output, F, A) -> (F, n_output*A); column index = head*n_atoms + atom,
    # zero-padded to k_pad lanes.
    w_p_flat = jnp.transpose(w_p, (1, 0, 2)).reshape(n_features, k)
    w_p_flat = jnp.zeros((n_features, k_pad), jnp.float32).at[:, :k].set(w_p_flat)

    # Head biases; padded lanes get -1e9 so exp(logit - max) underflows to 0.
    b_p_flat = jnp.full((1, k_pad), -1e9, jnp.float32).at[0, :k].set(b_p.reshape(-1))

    b_phi_2d = b_phi.reshape(1, n_features).astype(jnp.float32)

    # Combined indicator matrix (a_values folded in):
    #   S[h*A + a, h]            = 1            (denominator)
    #   S[h*A + a, out_pad + h]  = a_values[a]  (numerator / expectation)
    rows = jnp.arange(k)
    head = jnp.repeat(jnp.arange(n_output), n_atoms)
    s = jnp.zeros((k_pad, 2 * out_pad), jnp.float32)
    s = s.at[rows, head].set(1.0)
    s = s.at[rows, out_pad + head].set(jnp.tile(a_values.astype(jnp.float32), n_output))

    return dict(
        w_phi=w_phi.astype(compute_dtype),
        b_phi_2d=b_phi_2d,
        w_p_flat=w_p_flat.astype(compute_dtype),
        b_p_flat=b_p_flat,
        s_comb=s.astype(compute_dtype),
    )


def _pick_tile_b(batch, cap=4096):
    """Largest batch tile that divides B, is a multiple of 8 (sublane aligned),
    is <= cap, and leaves >= 2 grid steps so v7x can shard across both TCs."""
    if batch <= 8:
        return batch
    best = None
    limit = min(cap, batch // 2)
    t = 8
    while t <= limit:
        if batch % t == 0:
            best = t
        t += 8
    return best if best is not None else batch


def categorical_network_forward(state, params, *, n_output, tile_b=None):
    """CategoricalNetwork forward (action=None, get_distribution=False)."""
    B, in_dim = state.shape
    n_features = params["w_phi"].shape[1]
    k_pad = params["w_p_flat"].shape[1]
    s_cols = params["s_comb"].shape[1]

    if tile_b is None:
        tile_b = _pick_tile_b(B)
    assert B % tile_b == 0, "batch must be divisible by the batch tile"
    grid = (B // tile_b,)

    state = state.astype(params["w_phi"].dtype)

    # Grid-invariant (resident) operand spec.
    def rep(shape):
        return pl.BlockSpec(shape, lambda i: (0,) * len(shape))

    q = pl.pallas_call(
        _categorical_kernel,
        out_shape=jax.ShapeDtypeStruct((B, n_output), jnp.float32),
        grid=grid,
        in_specs=[
            pl.BlockSpec((tile_b, in_dim), lambda i: (i, 0)),   # state
            rep((in_dim, n_features)),                          # w_phi
            rep((1, n_features)),                               # b_phi
            rep((n_features, k_pad)),                           # fused head weights
            rep((1, k_pad)),                                    # fused head biases
            rep((k_pad, s_cols)),                               # combined indicator
        ],
        out_specs=pl.BlockSpec((tile_b, n_output), lambda i: (i, 0)),
        compiler_params=pltpu.CompilerParams(
            dimension_semantics=("parallel",),
            vmem_limit_bytes=48 * 1024 * 1024),
    )(state, params["w_phi"], params["b_phi_2d"], params["w_p_flat"],
      params["b_p_flat"], params["s_comb"])

    return q


def _xavier_uniform(key, shape_in_out):
    # gain('linear') == 1.0 ; shape is (fan_in, fan_out) in our (in, out) layout
    fan_in, fan_out = shape_in_out
    bound = math.sqrt(6.0 / (fan_in + fan_out))
    return jax.random.uniform(key, shape_in_out, jnp.float32, -bound, bound)


if __name__ == "__main__":
    # Small, module-consistent shapes.
    B = 8            # batch
    IN_DIM = 16      # input_shape = (16,)
    N_FEATURES = 32
    N_OUTPUT = 4     # output_shape = (4,)
    N_ATOMS = 16
    V_MIN, V_MAX = -1.0, 1.0

    key = jax.random.PRNGKey(0)
    k_state, k_wphi, k_bphi, k_wp, k_bp = jax.random.split(key, 5)

    # features_network: single hidden Linear(IN_DIM, N_FEATURES) + ReLU.
    w_phi = _xavier_uniform(k_wphi, (IN_DIM, N_FEATURES))
    b_phi = jax.random.uniform(k_bphi, (N_FEATURES,), jnp.float32, -0.1, 0.1)

    # Per-action categorical heads: Linear(N_FEATURES, N_ATOMS), xavier_uniform weights.
    wp_keys = jax.random.split(k_wp, N_OUTPUT)
    w_p = jnp.stack([_xavier_uniform(k, (N_FEATURES, N_ATOMS)) for k in wp_keys], axis=0)
    b_p = jax.random.uniform(k_bp, (N_OUTPUT, N_ATOMS), jnp.float32, -0.1, 0.1)

    # Atom support: torch.arange(v_min, v_max + eps, delta), delta = (v_max-v_min)/(n_atoms-1)
    delta = (V_MAX - V_MIN) / (N_ATOMS - 1)
    a_values = V_MIN + delta * jnp.arange(N_ATOMS, dtype=jnp.float32)

    state = jax.random.normal(k_state, (B, IN_DIM), jnp.float32)

    # One-time parameter prep (reshapes/padding/indicator build hoisted out of the call path).
    # f32 compute path here to hold the 1e-5 reference tolerance; pass
    # compute_dtype=jnp.bfloat16 for large-batch deployment.
    params = prepare_params(w_phi, b_phi, w_p, b_p, a_values, N_OUTPUT, N_ATOMS)

    forward = jax.jit(functools.partial(categorical_network_forward, n_output=N_OUTPUT))
    q = forward(state, params)
    q = jax.block_until_ready(q)

    # Pure-JAX reference check.
    feats_ref = jnp.maximum(state @ w_phi + b_phi, 0.0)
    logits_ref = jnp.einsum('bf,ofa->boa', feats_ref, w_p) + b_p[None]
    p_ref = jax.nn.softmax(logits_ref, axis=-1)
    q_ref = jnp.einsum('boa,a->bo', p_ref, a_values)
    assert q.shape == (B, N_OUTPUT)
    assert jnp.allclose(q, q_ref, atol=1e-5, rtol=1e-5)

    # TODO(synk): the action-gather and get_distribution=True branches of the
    # PyTorch forward are not implemented (default-path semantics only).

    print("KERNEL_OK")
</pallas_src>

<mosaic_0001>
module attributes {stable_mosaic.version = 11 : i64} {
  func.func @_categorical_kernel(%arg0: i32, %arg1: memref<8x16xf32, #tpu.memory_space<vmem>>, %arg2: memref<16x32xf32, #tpu.memory_space<vmem>>, %arg3: memref<1x32xf32, #tpu.memory_space<vmem>>, %arg4: memref<32x128xf32, #tpu.memory_space<vmem>>, %arg5: memref<1x128xf32, #tpu.memory_space<vmem>>, %arg6: memref<128x256xf32, #tpu.memory_space<vmem>>, %arg7: memref<8x4xf32, #tpu.memory_space<vmem>>) attributes {dimension_semantics = [#tpu.dimension_semantics<parallel>], iteration_bounds = array<i64: 1>, scalar_prefetch = 0 : i64, scratch_operands = 0 : i64, tpu.core_type = #tpu.core_type<tc>, window_params = [{transform_indices = @transform_0, window_bounds = array<i64: 8, 16>}, {pipeline_mode = #tpu.pipeline_mode<synchronous>, transform_indices = @transform_1, window_bounds = array<i64: 16, 32>}, {pipeline_mode = #tpu.pipeline_mode<synchronous>, transform_indices = @transform_2, window_bounds = array<i64: 1, 32>}, {pipeline_mode = #tpu.pipeline_mode<synchronous>, transform_indices = @transform_3, window_bounds = array<i64: 32, 128>}, {pipeline_mode = #tpu.pipeline_mode<synchronous>, transform_indices = @transform_4, window_bounds = array<i64: 1, 128>}, {pipeline_mode = #tpu.pipeline_mode<synchronous>, transform_indices = @transform_5, window_bounds = array<i64: 128, 256>}, {transform_indices = @transform_6, window_bounds = array<i64: 8, 4>}]} {
    %c0 = arith.constant 0 : index
    %c0_0 = arith.constant 0 : index
    %0 = vector.load %arg1[%c0, %c0_0] : memref<8x16xf32, #tpu.memory_space<vmem>>, vector<8x16xf32>
    %c0_1 = arith.constant 0 : index
    %c0_2 = arith.constant 0 : index
    %1 = vector.load %arg2[%c0_1, %c0_2] : memref<16x32xf32, #tpu.memory_space<vmem>>, vector<16x32xf32>
    %cst = arith.constant dense<0.000000e+00> : vector<8x32xf32>
    %2 = tpu.matmul %0, %1, %cst {dimension_numbers = #tpu.dot_dimension_numbers<[1], [0], [0], [1], [0, 0, 1, 1], [], []>} : vector<8x16xf32>, vector<16x32xf32>, vector<8x32xf32> -> vector<8x32xf32>
    %c0_3 = arith.constant 0 : index
    %c0_4 = arith.constant 0 : index
    %3 = vector.load %arg3[%c0_3, %c0_4] : memref<1x32xf32, #tpu.memory_space<vmem>>, vector<1x32xf32>
    %4 = vector.broadcast %3 : vector<1x32xf32> to vector<8x32xf32>
    %5 = arith.addf %2, %4 : vector<8x32xf32>
    %cst_5 = arith.constant 0.000000e+00 : f32
    %6 = vector.broadcast %cst_5 : f32 to vector<8x32xf32>
    %7 = arith.maximumf %5, %6 : vector<8x32xf32>
    %c0_6 = arith.constant 0 : index
    %c0_7 = arith.constant 0 : index
    %8 = vector.load %arg4[%c0_6, %c0_7] : memref<32x128xf32, #tpu.memory_space<vmem>>, vector<32x128xf32>
    %cst_8 = arith.constant dense<0.000000e+00> : vector<8x128xf32>
    %9 = tpu.matmul %7, %8, %cst_8 {dimension_numbers = #tpu.dot_dimension_numbers<[1], [0], [0], [1], [0, 0, 1, 1], [], []>} : vector<8x32xf32>, vector<32x128xf32>, vector<8x128xf32> -> vector<8x128xf32>
    %c0_9 = arith.constant 0 : index
    %c0_10 = arith.constant 0 : index
    %10 = vector.load %arg5[%c0_9, %c0_10] : memref<1x128xf32, #tpu.memory_space<vmem>>, vector<1x128xf32>
    %11 = vector.broadcast %10 : vector<1x128xf32> to vector<8x128xf32>
    %12 = arith.addf %9, %11 : vector<8x128xf32>
    %cst_11 = arith.constant dense<0xFF800000> : vector<8xf32>
    %13 = vector.multi_reduction <maximumf>, %12, %cst_11 [1] : vector<8x128xf32> to vector<8xf32>
    %14 = vector.shape_cast %13 : vector<8xf32> to vector<8x1xf32>
    %15 = vector.broadcast %14 : vector<8x1xf32> to vector<8x128xf32>
    %16 = arith.subf %12, %15 : vector<8x128xf32>
    %17 = math.exp %16 : vector<8x128xf32>
    %c0_12 = arith.constant 0 : index
    %c0_13 = arith.constant 0 : index
    %18 = vector.load %arg6[%c0_12, %c0_13] : memref<128x256xf32, #tpu.memory_space<vmem>>, vector<128x256xf32>
    %cst_14 = arith.constant dense<0.000000e+00> : vector<8x256xf32>
    %19 = tpu.matmul %17, %18, %cst_14 {dimension_numbers = #tpu.dot_dimension_numbers<[1], [0], [0], [1], [0, 0, 1, 1], [], []>} : vector<8x128xf32>, vector<128x256xf32>, vector<8x256xf32> -> vector<8x256xf32>
    %20 = vector.extract_strided_slice %19 {offsets = [0, 0], sizes = [8, 128], strides = [1, 1]} : vector<8x256xf32> to vector<8x128xf32>
    %cst_15 = arith.constant 1.000000e-30 : f32
    %21 = vector.broadcast %cst_15 : f32 to vector<8x128xf32>
    %22 = arith.maximumf %20, %21 : vector<8x128xf32>
    %23 = vector.extract_strided_slice %19 {offsets = [0, 128], sizes = [8, 128], strides = [1, 1]} : vector<8x256xf32> to vector<8x128xf32>
    %24 = tpu.reciprocal %22 {approx = true} : vector<8x128xf32> -> vector<8x128xf32>
    %25 = arith.mulf %22, %24 : vector<8x128xf32>
    %cst_16 = arith.constant 2.000000e+00 : f32
    %26 = vector.broadcast %cst_16 : f32 to vector<8x128xf32>
    %27 = arith.subf %26, %25 : vector<8x128xf32>
    %28 = arith.mulf %24, %27 : vector<8x128xf32>
    %29 = arith.mulf %23, %28 : vector<8x128xf32>
    %30 = vector.extract_strided_slice %29 {offsets = [0, 0], sizes = [8, 4], strides = [1, 1]} : vector<8x128xf32> to vector<8x4xf32>
    %c0_17 = arith.constant 0 : index
    %c0_18 = arith.constant 0 : index
    %31 = vector.load %arg7[%c0_17, %c0_18] : memref<8x4xf32, #tpu.memory_space<vmem>>, vector<8x4xf32>
    tpu.vector_store %arg7[%c0_17, %c0_18], %30 {strides = array<i32>} : memref<8x4xf32, #tpu.memory_space<vmem>>, vector<8x4xf32>,
    return
  }
  func.func @transform_0(%arg0: i32) -> (i32, i32) {
    %c0_i32 = arith.constant 0 : i32
    %c0_i32_0 = arith.constant 0 : i32
    return %arg0, %c0_i32 : i32, i32
  }
  func.func @transform_1(%arg0: i32) -> (i32, i32) {
    %c0_i32 = arith.constant 0 : i32
    %c0_i32_0 = arith.constant 0 : i32
    %c0_i32_1 = arith.constant 0 : i32
    return %c0_i32, %c0_i32_0 : i32, i32
  }
  func.func @transform_2(%arg0: i32) -> (i32, i32) {
    %c0_i32 = arith.constant 0 : i32
    %c0_i32_0 = arith.constant 0 : i32
    %c0_i32_1 = arith.constant 0 : i32
    return %c0_i32, %c0_i32_0 : i32, i32
  }
  func.func @transform_3(%arg0: i32) -> (i32, i32) {
    %c0_i32 = arith.constant 0 : i32
    %c0_i32_0 = arith.constant 0 : i32
    %c0_i32_1 = arith.constant 0 : i32
    return %c0_i32, %c0_i32_0 : i32, i32
  }
  func.func @transform_4(%arg0: i32) -> (i32, i32) {
    %c0_i32 = arith.constant 0 : i32
    %c0_i32_0 = arith.constant 0 : i32
    %c0_i32_1 = arith.constant 0 : i32
    return %c0_i32, %c0_i32_0 : i32, i32
  }
  func.func @transform_5(%arg0: i32) -> (i32, i32) {
    %c0_i32 = arith.constant 0 : i32
    %c0_i32_0 = arith.constant 0 : i32
    %c0_i32_1 = arith.constant 0 : i32
    return %c0_i32, %c0_i32_0 : i32, i32
  }
  func.func @transform_6(%arg0: i32) -> (i32, i32) {
    %c0_i32 = arith.constant 0 : i32
    %c0_i32_0 = arith.constant 0 : i32
    return %arg0, %c0_i32 : i32, i32
  }
}

</mosaic_0001>

<llo_original>
// kernel: categorical_network_forward.1
$region0: #{categorical_network_forward.1}
  #allocation0 [shape = 'u32[]', space=smem, size = 0x4, offset = 0x4, fixed_abs, tag = 'smem constant byte address 0x4 - core index']
  #allocation1 [shape = 'u32[72,128]{1,0:T(1,128)}', space=vmem, size = 0x9000, scoped, tag = 'internal scratch']
  %s0 = inlined_call_operand.hbm [shape: f32[8,16], index: 0, kind: input, shape index: {}]
  %s1 = inlined_call_operand.hbm [shape: f32[16,32], index: 1, kind: input, shape index: {}]
  %s2 = inlined_call_operand.vmem [shape: f32[1,32], index: 2, kind: input, shape index: {}]
  %s3 = inlined_call_operand.hbm [shape: f32[32,128], index: 3, kind: input, shape index: {}]
  %s4 = inlined_call_operand.hbm [shape: f32[1,128], index: 4, kind: input, shape index: {}]
  %s5 = inlined_call_operand.hbm [shape: f32[128,256], index: 5, kind: input, shape index: {}]
  %s6 = inlined_call_operand.vmem [shape: f32[8,4], index: 6, kind: output, shape index: {}]
  %s7 = sld [smem:[#allocation0]]
  $region54: #{categorical_network_forward.1} parent=0
    _
  %s9 = ssub.s32 1, %s7
  %s10 = scalar_select 0, %s9, %s7
  $region1: #{categorical_network_forward.1} parent=0
    #allocation2 [shape = 'u8[4096]{0}', space=vmem, size = 0x1000, scoped, tag = 'input window, operand 0, single buffered']
    #allocation3 [shape = 's32[1]{0}', space=sflag, size = 0x4, scoped, tag = 'scoped memory for categorical_network_forward.1']
    #allocation4 [shape = 'u8[8192]{0}', space=vmem, size = 0x2000, scoped, tag = 'input window, operand 1, single buffered']
    #allocation5 [shape = 's32[1]{0}', space=sflag, size = 0x4, scoped, tag = 'scoped memory for categorical_network_forward.1']
    #allocation6 [shape = 'u8[16384]{0}', space=vmem, size = 0x4000, scoped, tag = 'input window, operand 3, single buffered']
    #allocation7 [shape = 'u8[512]{0}', space=vmem, size = 0x400, scoped, tag = 'input window, operand 4, single buffered']
    #allocation8 [shape = 's32[1]{0}', space=sflag, size = 0x4, scoped, tag = 'scoped memory for categorical_network_forward.1']
    #allocation9 [shape = 'u8[131072]{0}', space=vmem, size = 0x20000, scoped, tag = 'input window, operand 5, single buffered']
    %11 = vsyncpa [#allocation3], 0
    %12 = vsyncpa [#allocation5], 0
    %13 = vsyncpa [#allocation8], 0
    // Predicated region
    $region2: #{categorical_network_forward.1} parent=1 // pred_check
      _
    $region3: #{categorical_network_forward.1} parent=1 // pred_check_branch
      %15 = sbr.rel (0) target = $region5
    $region4: #{categorical_network_forward.1} parent=1 // pred_region
      %17 = vsyncadd [#allocation3], 0
      %s19 = sshll.u32 %s0, 4
      %s20 = int_to_ptr.hbm [resolvable:$true] %s19
      %s21 = sshll.u32 [#allocation2], 4
      %s22 = int_to_ptr.vmem [resolvable:$true] %s21
      %24 = dma.hbm_to_vmem [thread:$0]  %s20, 128, %s22, [#allocation3]
    $region5: #{categorical_network_forward.1} parent=1 // pred_fallthru
      _
    // Predicated region
    $region6: #{categorical_network_forward.1} parent=1 // pred_check
      _
    $region7: #{categorical_network_forward.1} parent=1 // pred_check_branch
      %26 = sbr.rel (0) target = $region9
    $region8: #{categorical_network_forward.1} parent=1 // pred_region
      %28 = vsyncadd [#allocation5], 0
      %s29 = sshll.u32 %s1, 4
      %s30 = int_to_ptr.hbm [resolvable:$true] %s29
      %s31 = sshll.u32 [#allocation4], 4
      %s32 = int_to_ptr.vmem [resolvable:$true] %s31
      %37 = dma.hbm_to_vmem [thread:$0]  %s30, 256, %s32, [#allocation5], 128, 128, 8
    $region9: #{categorical_network_forward.1} parent=1 // pred_fallthru
      _
    // Predicated region
    $region10: #{categorical_network_forward.1} parent=1 // pred_check
      _
    $region11: #{categorical_network_forward.1} parent=1 // pred_check_branch
      %39 = sbr.rel (0) target = $region13
    $region12: #{categorical_network_forward.1} parent=1 // pred_region
      _
    $region13: #{categorical_network_forward.1} parent=1 // pred_fallthru
      _
    // Predicated region
    $region14: #{categorical_network_forward.1} parent=1 // pred_check
      _
    $region15: #{categorical_network_forward.1} parent=1 // pred_check_branch
      %41 = sbr.rel (0) target = $region17
    $region16: #{categorical_network_forward.1} parent=1 // pred_region
      %43 = vsyncadd [#allocation5], 0
      %s44 = sshll.u32 %s3, 4
      %s45 = int_to_ptr.hbm [resolvable:$true] %s44
      %s46 = sshll.u32 [#allocation6], 4
      %s47 = int_to_ptr.vmem [resolvable:$true] %s46
      %52 = dma.hbm_to_vmem [thread:$0]  %s45, 512, %s47, [#allocation5], 128, 128, 8
    $region17: #{categorical_network_forward.1} parent=1 // pred_fallthru
      _
    // Predicated region
    $region18: #{categorical_network_forward.1} parent=1 // pred_check
      _
    $region19: #{categorical_network_forward.1} parent=1 // pred_check_branch
      %54 = sbr.rel (0) target = $region21
    $region20: #{categorical_network_forward.1} parent=1 // pred_region
      %56 = vsyncadd [#allocation8], 0
      %s58 = sshll.u32 %s4, 4
      %s59 = int_to_ptr.hbm [resolvable:$true] %s58
      %s60 = sshll.u32 [#allocation7], 4
      %s61 = int_to_ptr.vmem [resolvable:$true] %s60
      %63 = dma.hbm_to_vmem [thread:$0]  %s59, 16, %s61, [#allocation8]
    $region21: #{categorical_network_forward.1} parent=1 // pred_fallthru
      _
    // Predicated region
    $region22: #{categorical_network_forward.1} parent=1 // pred_check
      _
    $region23: #{categorical_network_forward.1} parent=1 // pred_check_branch
      %65 = sbr.rel (0) target = $region25
    $region24: #{categorical_network_forward.1} parent=1 // pred_region
      %67 = vsyncadd [#allocation8], 0
      %s68 = sshll.u32 %s5, 4
      %s69 = int_to_ptr.hbm [resolvable:$true] %s68
      %s70 = sshll.u32 [#allocation9], 4
      %s71 = int_to_ptr.vmem [resolvable:$true] %s70
      %76 = dma.hbm_to_vmem [thread:$0]  %s69, 4096, %s71, [#allocation8], 256, 256, 16
    $region25: #{categorical_network_forward.1} parent=1 // pred_fallthru
      _
    // Predicated region
    $region26: #{categorical_network_forward.1} parent=1 // pred_check
      _
    $region27: #{categorical_network_forward.1} parent=1 // pred_check_branch
      %78 = sbr.rel (0) target = $region29
    $region28: #{categorical_network_forward.1} parent=1 // pred_region
      %80 = dma.done [#allocation3], 128
    $region29: #{categorical_network_forward.1} parent=1 // pred_fallthru
      _
    // Predicated region
    $region30: #{categorical_network_forward.1} parent=1 // pred_check
      _
    $region31: #{categorical_network_forward.1} parent=1 // pred_check_branch
      %82 = sbr.rel (0) target = $region33
    $region32: #{categorical_network_forward.1} parent=1 // pred_region
      %84 = dma.done [#allocation5], 256
    $region33: #{categorical_network_forward.1} parent=1 // pred_fallthru
      _
    // Predicated region
    $region34: #{categorical_network_forward.1} parent=1 // pred_check
      _
    $region35: #{categorical_network_forward.1} parent=1 // pred_check_branch
      %86 = sbr.rel (0) target = $region37
    $region36: #{categorical_network_forward.1} parent=1 // pred_region
      %88 = dma.done [#allocation5], 512
    $region37: #{categorical_network_forward.1} parent=1 // pred_fallthru
      _
    // Predicated region
    $region38: #{categorical_network_forward.1} parent=1 // pred_check
      _
    $region39: #{categorical_network_forward.1} parent=1 // pred_check_branch
      %90 = sbr.rel (0) target = $region41
    $region40: #{categorical_network_forward.1} parent=1 // pred_region
      %92 = dma.done [#allocation8], 16
    $region41: #{categorical_network_forward.1} parent=1 // pred_fallthru
      _
    // Predicated region
    $region42: #{categorical_network_forward.1} parent=1 // pred_check
      _
    $region43: #{categorical_network_forward.1} parent=1 // pred_check_branch
      %94 = sbr.rel (0) target = $region45
    $region44: #{categorical_network_forward.1} parent=1 // pred_region
      %96 = dma.done [#allocation8], 4096
    $region45: #{categorical_network_forward.1} parent=1 // pred_fallthru
      _
    %v97 = vld [vmem:[#allocation2] sm:$0xff]
    %v98 = vld [vmem:[#allocation4] sm:$0xff]
    %v99 = vld [vmem:[#allocation4 + $0x8] sm:$0xff]
    %v100 = vld [vmem:[%s2] sm:$0x1]
    %v102 = vperm.slane %v100, 0
    %vm104 = vcmask 130048
    %v106 = vsel %vm104, %v97, 0
    %108 = vmatpush.msra.mxu0 0.0
    %109 = vmatpush.msra.mxu0 0.0
    %110 = vmatpush.msra.mxu0 0.0
    %111 = vmatpush.msra.mxu0 0.0
    %112 = vmatpush.msra.mxu0 0.0
    %113 = vmatpush.msra.mxu0 0.0
    %114 = vmatpush.msra.mxu0 0.0
    %115 = vmatpush.msra.mxu0 0.0
    %116 = vmatpush.msra.mxu0 0.0
    %117 = vmatpush.msra.mxu0 0.0
    %118 = vmatpush.msra.mxu0 0.0
    %119 = vmatpush.msra.mxu0 0.0
    %120 = vmatpush.msra.mxu0 0.0
    %121 = vmatpush.msra.mxu0 0.0
    %122 = vmatpush.msra.mxu0 %v99
    %123 = vmatpush.msra.mxu0 %v98
    %124 = vmatmul.f32.gmra.mxu0 %v106
    %v125 = vpop.f32.mrf.mxu0
    %v126 = vadd.f32 %v102, %v125
    %127 = vdwg.mxu0
    %v128 = vmax.f32 %v126, 0.0
    %v129 = vld [vmem:[#allocation6] sm:$0xff]
    %v130 = vld [vmem:[#allocation6 + $0x8] sm:$0xff]
    %v131 = vld [vmem:[#allocation6 + $0x10] sm:$0xff]
    %v132 = vld [vmem:[#allocation6 + $0x18] sm:$0xff]
    %v133 = vld [vmem:[#allocation7] sm:$0x1]
    %v135 = vperm.slane %v133, 0
    %vm137 = vcmask 261120
    %v139 = vsel %vm137, %v128, 0
    %141 = vmatpush.msra.mxu0 0.0
    %142 = vmatpush.msra.mxu0 0.0
    %143 = vmatpush.msra.mxu0 0.0
    %144 = vmatpush.msra.mxu0 0.0
    %145 = vmatpush.msra.mxu0 0.0
    %146 = vmatpush.msra.mxu0 0.0
    %147 = vmatpush.msra.mxu0 0.0
    %148 = vmatpush.msra.mxu0 0.0
    %149 = vmatpush.msra.mxu0 0.0
    %150 = vmatpush.msra.mxu0 0.0
    %151 = vmatpush.msra.mxu0 0.0
    %152 = vmatpush.msra.mxu0 0.0
    %153 = vmatpush.msra.mxu0 %v132
    %154 = vmatpush.msra.mxu0 %v131
    %155 = vmatpush.msra.mxu0 %v130
    %156 = vmatpush.msra.mxu0 %v129
    %157 = vmatmul.f32.gmra.mxu0 %v139
    %v158 = vpop.f32.mrf.mxu0
    %v159 = vadd.f32 %v135, %v158
    %160 = vdwg.mxu0
    %161 = vmax.xlane.f32.xlu0 %v159
    %v162 = vpop.xlane.xlu0 %161
    %v163 = vsub.f32 %v159, %v162
    %v164 = vmul.f32 %v163, 1.442695
    %v165 = vpow.pop %v164
    %v166 = vld [vmem:[#allocation9] sm:$0xff]
    %v167 = vld [vmem:[#allocation9 + $0x8] sm:$0xff]
    %v168 = vld [vmem:[#allocation9 + $0x10] sm:$0xff]
    %v169 = vld [vmem:[#allocation9 + $0x18] sm:$0xff]
    %v170 = vld [vmem:[#allocation9 + $0x20] sm:$0xff]
    %v171 = vld [vmem:[#allocation9 + $0x28] sm:$0xff]
    %v172 = vld [vmem:[#allocation9 + $0x30] sm:$0xff]
    %v173 = vld [vmem:[#allocation9 + $0x38] sm:$0xff]
    %v174 = vld [vmem:[#allocation9 + $0x40] sm:$0xff]
    %v175 = vld [vmem:[#allocation9 + $0x48] sm:$0xff]
    %v176 = vld [vmem:[#allocation9 + $0x50] sm:$0xff]
    %v177 = vld [vmem:[#allocation9 + $0x58] sm:$0xff]
    %v178 = vld [vmem:[#allocation9 + $0x60] sm:$0xff]
    %v179 = vld [vmem:[#allocation9 + $0x68] sm:$0xff]
    %v180 = vld [vmem:[#allocation9 + $0x70] sm:$0xff]
    %v181 = vld [vmem:[#allocation9 + $0x78] sm:$0xff]
    %v182 = vld [vmem:[#allocation9 + $0x80] sm:$0xff]
    %v183 = vld [vmem:[#allocation9 + $0x88] sm:$0xff]
    %v184 = vld [vmem:[#allocation9 + $0x90] sm:$0xff]
    %v185 = vld [vmem:[#allocation9 + $0x98] sm:$0xff]
    %v186 = vld [vmem:[#allocation9 + $0xa0] sm:$0xff]
    %v187 = vld [vmem:[#allocation9 + $0xa8] sm:$0xff]
    %v188 = vld [vmem:[#allocation9 + $0xb0] sm:$0xff]
    %v189 = vld [vmem:[#allocation9 + $0xb8] sm:$0xff]
    %v190 = vld [vmem:[#allocation9 + $0xc0] sm:$0xff]
    %v191 = vld [vmem:[#allocation9 + $0xc8] sm:$0xff]
    %v192 = vld [vmem:[#allocation9 + $0xd0] sm:$0xff]
    %v193 = vld [vmem:[#allocation9 + $0xd8] sm:$0xff]
    %v194 = vld [vmem:[#allocation9 + $0xe0] sm:$0xff]
    %v195 = vld [vmem:[#allocation9 + $0xe8] sm:$0xff]
    %v196 = vld [vmem:[#allocation9 + $0xf0] sm:$0xff]
    %v197 = vld [vmem:[#allocation9 + $0xf8] sm:$0xff]
    %198 = vmatpush.msra.mxu0 %v196
    %199 = vmatpush.msra.mxu0 %v194
    %200 = vmatpush.msra.mxu0 %v192
    %201 = vmatpush.msra.mxu0 %v190
    %202 = vmatpush.msra.mxu0 %v188
    %203 = vmatpush.msra.mxu0 %v186
    %204 = vmatpush.msra.mxu0 %v184
    %205 = vmatpush.msra.mxu0 %v182
    %206 = vmatpush.msra.mxu0 %v180
    %207 = vmatpush.msra.mxu0 %v178
    %208 = vmatpush.msra.mxu0 %v176
    %209 = vmatpush.msra.mxu0 %v174
    %210 = vmatpush.msra.mxu0 %v172
    %211 = vmatpush.msra.mxu0 %v170
    %212 = vmatpush.msra.mxu0 %v168
    %213 = vmatpush.msra.mxu0 %v166
    %214 = vmatmul.f32.gmra.mxu0 %v165
    %v215 = vpop.f32.mrf.mxu0
    %v216 = vadd.f32 0.0, %v215
    %217 = vdwg.mxu0
    %218 = vmatpush.msra.mxu0 %v197
    %219 = vmatpush.msra.mxu0 %v195
    %220 = vmatpush.msra.mxu0 %v193
    %221 = vmatpush.msra.mxu0 %v191
    %222 = vmatpush.msra.mxu0 %v189
    %223 = vmatpush.msra.mxu0 %v187
    %224 = vmatpush.msra.mxu0 %v185
    %225 = vmatpush.msra.mxu0 %v183
    %226 = vmatpush.msra.mxu0 %v181
    %227 = vmatpush.msra.mxu0 %v179
    %228 = vmatpush.msra.mxu0 %v177
    %229 = vmatpush.msra.mxu0 %v175
    %230 = vmatpush.msra.mxu0 %v173
    %231 = vmatpush.msra.mxu0 %v171
    %232 = vmatpush.msra.mxu0 %v169
    %233 = vmatpush.msra.mxu0 %v167
    %234 = vmatmul.f32.gmra.mxu0 %v165
    %v235 = vpop.f32.mrf.mxu0
    %v236 = vadd.f32 0.0, %v235
    %237 = vdwg.mxu0
    %v238 = vmax.f32 %v216, 1e-30
    %v239 = vrcp.pop %v238
    %v240 = vmul.f32 %v238, %v239
    %v241 = vsub.f32 2.0, %v240
    %v242 = vmul.f32 %v239, %v241
    %v243 = vmul.f32 %v236, %v242
    %vm244 = vcmask 31744
    %245 = vst.msk [vmem:[%s6] sm:$0xff] %vm244, %v243
    // Predicated region
    $region46: #{categorical_network_forward.1} parent=1 // pred_check
      _
    $region47: #{categorical_network_forward.1} parent=1 // pred_check_branch
      %247 = sbr.rel (0) target = $region49
    $region48: #{categorical_network_forward.1} parent=1 // pred_region
      _
    $region49: #{categorical_network_forward.1} parent=1 // pred_fallthru
      _
    // Predicated region
    $region50: #{categorical_network_forward.1} parent=1 // pred_check
      _
    $region51: #{categorical_network_forward.1} parent=1 // pred_check_branch
      %249 = sbr.rel (0) target = $region53
    $region52: #{categorical_network_forward.1} parent=1 // pred_region
      _
    $region53: #{categorical_network_forward.1} parent=1 // pred_fallthru
      _
    %250 = vsyncpa [#allocation3], 1
    %251 = vsyncpa [#allocation5], 1
    %252 = vsyncpa [#allocation8], 1

</llo_original>
